<compile_context>
chip_gen: v6e
topology: v6e:2x2x1
jax: 0.10.0
libtpu: 0.0.40
codegen_flags: <defaults>
</compile_context>

<pallas_src>
import functools

import jax
import jax.numpy as jnp
import numpy as np
from jax.experimental import pallas as pl
from jax.experimental.pallas import tpu as pltpu


def _round_up(x, m):
    return ((x + m - 1) // m) * m


def _unlit_kernel(face_range_ref, p2f_ref, bary_ref, table_ref, out_ref,
                  acc_ref, *, tile_f, c, c_pad, table_resident, hit_dtype):
    # face_range_ref : (2 * n_pixel_tiles,) int32 SMEM  [lo_0, hi_0, lo_1, ...]
    # p2f_ref        : (1, TP)      int32   pix_to_face K=0 sample (-1 = bg)
    # bary_ref       : (3, TP)      float32 barycentric coords, K=0 sample
    # table_ref      : (3*C_pad, F_pad) or (3*C_pad, TF)  per-face vertex colors
    # out_ref        : (C, TP)      float32 lane-dense output block
    # acc_ref        : (3*C_pad, TP) float32 accumulator over face tiles
    i = pl.program_id(0)
    k = pl.program_id(1)

    @pl.when(k == 0)
    def _init():
        acc_ref[...] = jnp.zeros_like(acc_ref)

    # Face-id range touched by this pixel tile (scalar prefetch -> SMEM).
    lo = face_range_ref[2 * i]
    hi = face_range_ref[2 * i + 1]
    tile_lo = k * tile_f
    overlaps = jnp.logical_and(tile_lo <= hi, tile_lo + tile_f > lo)

    @pl.when(overlaps)
    def _compute():
        tp = p2f_ref.shape[1]
        # Offset applied to the small (1, TP) operand, not the (TF, TP) iota.
        local = p2f_ref[...] - tile_lo                               # (1, TP)
        ids = jax.lax.broadcasted_iota(jnp.int32, (tile_f, tp), 0)   # (TF, TP)
        # One-hot hit matrix: hit[f, p] = 1 iff pixel p hits face tile_lo + f.
        hit = (ids == local).astype(hit_dtype)                       # (TF, TP)
        if table_resident:
            start = pl.multiple_of(tile_lo, 128)
            tab = table_ref[:, pl.ds(start, tile_f)]                 # (3C_pad, TF)
        else:
            tab = table_ref[...]                                     # (3C_pad, TF)
        # Gather all 3*C per-face vertex-color attributes in one MXU push.
        acc_ref[...] += jnp.dot(tab, hit,
                                preferred_element_type=jnp.float32)  # (3C_pad, TP)

    @pl.when(k == pl.num_programs(1) - 1)
    def _finalize():
        bary = bary_ref[...]                                         # (3, TP)
        g = acc_ref[...]                                             # (3C_pad, TP)
        # Attribute groups start at sublane-aligned rows 0 / C_pad / 2*C_pad.
        res = (bary[0:1] * g[0:c]
               + bary[1:2] * g[c_pad:c_pad + c]
               + bary[2:3] * g[2 * c_pad:2 * c_pad + c])             # (C, TP)
        out_ref[...] = res.astype(out_ref.dtype)


def unlit_shader_pallas(pix_to_face, bary_coords, faces, verts_colors,
                        *, tile_p=1024, tile_f=2048,
                        table_dtype=jnp.float32,
                        resident_table_max_bytes=4 * 1024 * 1024):
    """pix_to_face: (N,H,W,K) int32; bary_coords: (N,H,W,K,3) f32;
    faces: (F,3) int32; verts_colors: (V,C) f32  ->  (N,H,W,C) f32"""
    N, H, W, K = pix_to_face.shape
    C = verts_colors.shape[1]
    num_faces = faces.shape[0]
    P = N * H * W
    C_pad = _round_up(C, 8)           # sublane-aligned attribute groups

    # --- glue (plain XLA): (3*C_pad, F) color table, faces on the lane axis.
    # (Hoist this out of the per-frame path when faces/verts_colors are static.)
    face_colors = verts_colors[faces].astype(jnp.float32)           # (F, 3, C)
    face_colors = jnp.pad(face_colors, ((0, 0), (0, 0), (0, C_pad - C)))
    table = face_colors.reshape(num_faces, 3 * C_pad).T             # (3*C_pad, F)
    table = table.astype(table_dtype)

    # --- glue: K=0 sample, pixels on the lane axis -------------------------
    p2f0 = pix_to_face[..., 0].reshape(-1).astype(jnp.int32)        # (P,)
    bary0 = bary_coords[..., 0, :].reshape(-1, 3).astype(jnp.float32)  # (P, 3)

    # Tile sizes: multiples of 128, capped at the (rounded) problem size.
    tile_p = min(_round_up(max(tile_p, 128), 128), _round_up(P, 128))
    # Keep >= 2 pixel tiles when P allows so both v7x TensorCores get work.
    if P > 128 and _round_up(P, tile_p) // tile_p < 2:
        tile_p = max(128, _round_up((P + 1) // 2, 128))
    tile_f = min(_round_up(max(tile_f, 128), 128), _round_up(num_faces, 128))
    P_pad = _round_up(P, tile_p)
    F_pad = _round_up(num_faces, tile_f)
    n_pt = P_pad // tile_p
    n_ft = F_pad // tile_f

    # Pad (padded pixels are background, padded faces are never referenced).
    p2f_flat = jnp.pad(p2f0, (0, P_pad - P), constant_values=-1)     # (P_pad,)
    bary_p = jnp.pad(bary0, ((0, P_pad - P), (0, 0))).T              # (3, P_pad)
    table_p = jnp.pad(table, ((0, 0), (0, F_pad - num_faces)))       # (3C_pad, F_pad)

    # Per-pixel-tile face-id range for data-dependent face-tile skipping.
    p2f_tiles = p2f_flat.reshape(n_pt, tile_p)
    hi = jnp.max(p2f_tiles, axis=1)                                  # -1 if all bg
    lo = jnp.min(jnp.where(p2f_tiles >= 0, p2f_tiles, num_faces), axis=1)
    face_range = jnp.stack([lo, hi], axis=1).reshape(-1).astype(jnp.int32)

    p2f_p = p2f_flat[None, :]                                        # (1, P_pad)

    # One-hot is exact in bf16; only use it when the table is bf16 too so the
    # matmul stays on the native bf16 MXU path.
    if jnp.dtype(table_dtype) == jnp.dtype(jnp.bfloat16):
        hit_dtype = jnp.bfloat16
    else:
        hit_dtype = jnp.float32

    dsize_tab = jnp.dtype(table_dtype).itemsize
    table_bytes = int(table_p.size) * dsize_tab
    table_resident = table_bytes <= resident_table_max_bytes
    if table_resident:
        # Constant block index => DMA'd from HBM exactly once, sliced in-kernel.
        table_spec = pl.BlockSpec((3 * C_pad, F_pad), lambda i, k, fr: (0, 0))
    else:
        table_spec = pl.BlockSpec((3 * C_pad, tile_f), lambda i, k, fr: (0, k))

    kernel = functools.partial(
        _unlit_kernel, tile_f=tile_f, c=C, c_pad=C_pad,
        table_resident=table_resident, hit_dtype=hit_dtype)

    # Rough VMEM need: hit + iota intermediates, table buffer(s), accumulator,
    # double-buffered per-pixel streams.  Budget against 64 MiB/TC (v7x).
    hit_bytes = tile_f * tile_p * (jnp.dtype(hit_dtype).itemsize + 4)
    table_vmem = 2 * (table_bytes if table_resident
                      else 3 * C_pad * tile_f * dsize_tab)
    need = (hit_bytes + table_vmem
            + 3 * C_pad * tile_p * 4            # accumulator
            + 2 * 4 * tile_p * 8                # p2f + bary, double-buffered
            + 2 * C * tile_p * 4)               # output, double-buffered
    vmem_limit = int(min(max(2 * need, 32 * 1024 * 1024), 56 * 1024 * 1024))

    cost = pl.CostEstimate(
        flops=int(2 * (3 * C_pad) * F_pad * P_pad),
        transcendentals=0,
        bytes_accessed=int(table_bytes + int(p2f_p.size) * 4
                           + int(bary_p.size) * 4 + C * P_pad * 4))

    grid = (n_pt, n_ft)        # reduction (faces) axis last

    out = pl.pallas_call(
        kernel,
        out_shape=jax.ShapeDtypeStruct((C, P_pad), jnp.float32),
        grid_spec=pltpu.PrefetchScalarGridSpec(
            num_scalar_prefetch=1,
            grid=grid,
            in_specs=[
                pl.BlockSpec((1, tile_p), lambda i, k, fr: (0, i)),
                pl.BlockSpec((3, tile_p), lambda i, k, fr: (0, i)),
                table_spec,
            ],
            out_specs=pl.BlockSpec((C, tile_p), lambda i, k, fr: (0, i)),
            scratch_shapes=[pltpu.VMEM((3 * C_pad, tile_p), jnp.float32)],
        ),
        compiler_params=pltpu.CompilerParams(
            dimension_semantics=("parallel", "arbitrary"),
            vmem_limit_bytes=vmem_limit),
        cost_estimate=cost,
    )(face_range, p2f_p, bary_p, table_p)

    return out[:, :P].T.reshape(N, H, W, C)


def unlit_shader_ref(pix_to_face, bary_coords, faces, verts_colors):
    """Pure-JAX reference of the PyTorch forward (K=0 slice)."""
    face_colors = verts_colors[faces]                           # (F, 3, C)
    p2f0 = pix_to_face[..., 0]                                  # (N, H, W)
    bary0 = bary_coords[..., 0, :]                              # (N, H, W, 3)
    fc = face_colors[jnp.clip(p2f0, 0)]                         # (N, H, W, 3, C)
    out = jnp.sum(bary0[..., None] * fc, axis=-2)               # (N, H, W, C)
    return jnp.where((p2f0 >= 0)[..., None], out, 0.0)


if __name__ == "__main__":
    key = jax.random.PRNGKey(0)
    k_faces, k_cols, k_p2f, k_bary = jax.random.split(key, 4)

    # Small synthetic mesh + rasterizer fragments.
    N, H, W, K = 2, 20, 24, 4
    V, F, C = 64, 200, 3

    faces = jax.random.randint(k_faces, (F, 3), 0, V, dtype=jnp.int32)
    verts_colors = jax.random.uniform(k_cols, (V, C), dtype=jnp.float32)

    # pix_to_face in [-1, F): -1 marks background pixels.
    pix_to_face = jax.random.randint(k_p2f, (N, H, W, K), -1, F, dtype=jnp.int32)
    bary_raw = jax.random.uniform(k_bary, (N, H, W, K, 3), dtype=jnp.float32) + 1e-3
    bary_coords = bary_raw / jnp.sum(bary_raw, axis=-1, keepdims=True)

    ref = unlit_shader_ref(pix_to_face, bary_coords, faces, verts_colors)

    # 1) Default path: VMEM-resident table, f32, >= 2 pixel tiles.
    out = jax.block_until_ready(
        unlit_shader_pallas(pix_to_face, bary_coords, faces, verts_colors))
    np.testing.assert_allclose(np.asarray(out), np.asarray(ref),
                               rtol=1e-5, atol=1e-5)

    # 2) Small tiles: multi-tile pixel grid + face-axis reduction + tile skipping.
    out2 = jax.block_until_ready(
        unlit_shader_pallas(pix_to_face, bary_coords, faces, verts_colors,
                            tile_p=256, tile_f=128))
    np.testing.assert_allclose(np.asarray(out2), np.asarray(ref),
                               rtol=1e-5, atol=1e-5)

    # 3) Streamed (non-resident) table fallback path for very large meshes.
    out3 = jax.block_until_ready(
        unlit_shader_pallas(pix_to_face, bary_coords, faces, verts_colors,
                            tile_p=512, tile_f=128, resident_table_max_bytes=0))
    np.testing.assert_allclose(np.asarray(out3), np.asarray(ref),
                               rtol=1e-5, atol=1e-5)

    # 4) bf16 one-hot + bf16 table (native bf16 MXU path); colors are rounded
    #    to bf16 so compare with a looser tolerance.
    out4 = jax.block_until_ready(
        unlit_shader_pallas(pix_to_face, bary_coords, faces, verts_colors,
                            table_dtype=jnp.bfloat16))
    np.testing.assert_allclose(np.asarray(out4), np.asarray(ref),
                               rtol=2e-2, atol=2e-2)

    print("KERNEL_OK")
</pallas_src>

<mosaic_0001>
module attributes {stable_mosaic.version = 11 : i64} {
  func.func @_unlit_kernel(%arg0: i32, %arg1: i32, %arg2: memref<4xi32, #tpu.memory_space<smem>>, %arg3: memref<1x512xi32, #tpu.memory_space<vmem>>, %arg4: memref<3x512xf32, #tpu.memory_space<vmem>>, %arg5: memref<24x256xf32, #tpu.memory_space<vmem>>, %arg6: memref<3x512xf32, #tpu.memory_space<vmem>>, %arg7: memref<24x512xf32, #tpu.memory_space<vmem>>) attributes {dimension_semantics = [#tpu.dimension_semantics<parallel>, #tpu.dimension_semantics<arbitrary>], iteration_bounds = array<i64: 2, 1>, scalar_prefetch = 1 : i64, scratch_operands = 1 : i64, tpu.core_type = #tpu.core_type<tc>, window_params = [{transform_indices = @transform_0, window_bounds = array<i64: 1, 512>}, {transform_indices = @transform_1, window_bounds = array<i64: 3, 512>}, {pipeline_mode = #tpu.pipeline_mode<synchronous>, transform_indices = @transform_2, window_bounds = array<i64: 24, 256>}, {transform_indices = @transform_3, window_bounds = array<i64: 3, 512>}]} {
    %c0_i32 = arith.constant 0 : i32
    %0 = arith.cmpi eq, %arg1, %c0_i32 : i32
    %1 = arith.extui %0 : i1 to i32
    %c0_i32_0 = arith.constant 0 : i32
    %2 = arith.cmpi ne, %1, %c0_i32_0 : i32
    scf.if %2 {
      %cst = arith.constant 0.000000e+00 : f32
      %20 = vector.broadcast %cst : f32 to vector<24x512xf32>
      %c0 = arith.constant 0 : index
      %c0_6 = arith.constant 0 : index
      %21 = vector.load %arg7[%c0, %c0_6] : memref<24x512xf32, #tpu.memory_space<vmem>>, vector<24x512xf32>
      tpu.vector_store %arg7[%c0, %c0_6], %20 {strides = array<i32>} : memref<24x512xf32, #tpu.memory_space<vmem>>, vector<24x512xf32>,
    } else {
    }
    %c2_i32 = arith.constant 2 : i32
    %3 = arith.muli %c2_i32, %arg0 : i32
    %4 = arith.index_cast %3 : i32 to index
    %5 = memref.load %arg2[%4] : memref<4xi32, #tpu.memory_space<smem>>
    %c2_i32_1 = arith.constant 2 : i32
    %6 = arith.muli %c2_i32_1, %arg0 : i32
    %c1_i32 = arith.constant 1 : i32
    %7 = arith.addi %6, %c1_i32 : i32
    %8 = arith.index_cast %7 : i32 to index
    %9 = memref.load %arg2[%8] : memref<4xi32, #tpu.memory_space<smem>>
    %c256_i32 = arith.constant 256 : i32
    %10 = arith.muli %arg1, %c256_i32 : i32
    %11 = arith.cmpi sle, %10, %9 : i32
    %c256_i32_2 = arith.constant 256 : i32
    %12 = arith.addi %10, %c256_i32_2 : i32
    %13 = arith.cmpi sgt, %12, %5 : i32
    %14 = arith.andi %11, %13 : i1
    %15 = arith.extui %14 : i1 to i32
    %c0_i32_3 = arith.constant 0 : i32
    %16 = arith.cmpi ne, %15, %c0_i32_3 : i32
    scf.if %16 {
      %c0 = arith.constant 0 : index
      %c0_6 = arith.constant 0 : index
      %20 = vector.load %arg3[%c0, %c0_6] : memref<1x512xi32, #tpu.memory_space<vmem>>, vector<1x512xi32>
      %21 = vector.broadcast %10 : i32 to vector<1x512xi32>
      %22 = arith.subi %20, %21 : vector<1x512xi32>
      %23 = tpu.iota {dimensions = array<i32: 0>} : vector<256x512xi32>
      %24 = vector.broadcast %22 : vector<1x512xi32> to vector<256x512xi32>
      %25 = arith.cmpi eq, %23, %24 : vector<256x512xi32>
      %26 = arith.extui %25 : vector<256x512xi1> to vector<256x512xi32>
      %27 = arith.sitofp %26 : vector<256x512xi32> to vector<256x512xf32>
      %28 = tpu.assume_multiple %10, 128 : i32
      %c0_7 = arith.constant 0 : index
      %29 = arith.index_cast %28 : i32 to index
      %30 = vector.load %arg5[%c0_7, %29] : memref<24x256xf32, #tpu.memory_space<vmem>>, vector<24x256xf32>
      %c0_8 = arith.constant 0 : index
      %c0_9 = arith.constant 0 : index
      %31 = vector.load %arg7[%c0_8, %c0_9] : memref<24x512xf32, #tpu.memory_space<vmem>>, vector<24x512xf32>
      %cst = arith.constant dense<0.000000e+00> : vector<24x512xf32>
      %32 = tpu.matmul %30, %27, %cst {dimension_numbers = #tpu.dot_dimension_numbers<[1], [0], [0], [1], [0, 0, 1, 1], [], []>} : vector<24x256xf32>, vector<256x512xf32>, vector<24x512xf32> -> vector<24x512xf32>
      %33 = arith.addf %31, %32 : vector<24x512xf32>
      %c0_10 = arith.constant 0 : index
      %c0_11 = arith.constant 0 : index
      %34 = vector.load %arg7[%c0_10, %c0_11] : memref<24x512xf32, #tpu.memory_space<vmem>>, vector<24x512xf32>
      tpu.vector_store %arg7[%c0_10, %c0_11], %33 {strides = array<i32>} : memref<24x512xf32, #tpu.memory_space<vmem>>, vector<24x512xf32>,
    } else {
    }
    %c0_i32_4 = arith.constant 0 : i32
    %17 = arith.cmpi eq, %arg1, %c0_i32_4 : i32
    %18 = arith.extui %17 : i1 to i32
    %c0_i32_5 = arith.constant 0 : i32
    %19 = arith.cmpi ne, %18, %c0_i32_5 : i32
    scf.if %19 {
      %c0 = arith.constant 0 : index
      %c0_6 = arith.constant 0 : index
      %20 = vector.load %arg4[%c0, %c0_6] : memref<3x512xf32, #tpu.memory_space<vmem>>, vector<3x512xf32>
      %c0_7 = arith.constant 0 : index
      %c0_8 = arith.constant 0 : index
      %21 = vector.load %arg7[%c0_7, %c0_8] : memref<24x512xf32, #tpu.memory_space<vmem>>, vector<24x512xf32>
      %22 = vector.extract_strided_slice %20 {offsets = [0, 0], sizes = [1, 512], strides = [1, 1]} : vector<3x512xf32> to vector<1x512xf32>
      %23 = vector.extract_strided_slice %21 {offsets = [0, 0], sizes = [3, 512], strides = [1, 1]} : vector<24x512xf32> to vector<3x512xf32>
      %24 = vector.broadcast %22 : vector<1x512xf32> to vector<3x512xf32>
      %25 = arith.mulf %24, %23 : vector<3x512xf32>
      %26 = vector.extract_strided_slice %20 {offsets = [1, 0], sizes = [1, 512], strides = [1, 1]} : vector<3x512xf32> to vector<1x512xf32>
      %27 = vector.extract_strided_slice %21 {offsets = [8, 0], sizes = [3, 512], strides = [1, 1]} : vector<24x512xf32> to vector<3x512xf32>
      %28 = vector.broadcast %26 : vector<1x512xf32> to vector<3x512xf32>
      %29 = arith.mulf %28, %27 : vector<3x512xf32>
      %30 = arith.addf %25, %29 : vector<3x512xf32>
      %31 = vector.extract_strided_slice %20 {offsets = [2, 0], sizes = [1, 512], strides = [1, 1]} : vector<3x512xf32> to vector<1x512xf32>
      %32 = vector.extract_strided_slice %21 {offsets = [16, 0], sizes = [3, 512], strides = [1, 1]} : vector<24x512xf32> to vector<3x512xf32>
      %33 = vector.broadcast %31 : vector<1x512xf32> to vector<3x512xf32>
      %34 = arith.mulf %33, %32 : vector<3x512xf32>
      %35 = arith.addf %30, %34 : vector<3x512xf32>
      %c0_9 = arith.constant 0 : index
      %c0_10 = arith.constant 0 : index
      %36 = vector.load %arg6[%c0_9, %c0_10] : memref<3x512xf32, #tpu.memory_space<vmem>>, vector<3x512xf32>
      tpu.vector_store %arg6[%c0_9, %c0_10], %35 {strides = array<i32>} : memref<3x512xf32, #tpu.memory_space<vmem>>, vector<3x512xf32>,
    } else {
    }
    return
  }
  func.func @transform_0(%arg0: i32, %arg1: i32, %arg2: memref<4xi32, #tpu.memory_space<smem>>) -> (i32, i32) {
    %c0_i32 = arith.constant 0 : i32
    %c0_i32_0 = arith.constant 0 : i32
    return %c0_i32, %arg0 : i32, i32
  }
  func.func @transform_1(%arg0: i32, %arg1: i32, %arg2: memref<4xi32, #tpu.memory_space<smem>>) -> (i32, i32) {
    %c0_i32 = arith.constant 0 : i32
    %c0_i32_0 = arith.constant 0 : i32
    return %c0_i32, %arg0 : i32, i32
  }
  func.func @transform_2(%arg0: i32, %arg1: i32, %arg2: memref<4xi32, #tpu.memory_space<smem>>) -> (i32, i32) {
    %c0_i32 = arith.constant 0 : i32
    %c0_i32_0 = arith.constant 0 : i32
    %c0_i32_1 = arith.constant 0 : i32
    return %c0_i32, %c0_i32_0 : i32, i32
  }
  func.func @transform_3(%arg0: i32, %arg1: i32, %arg2: memref<4xi32, #tpu.memory_space<smem>>) -> (i32, i32) {
    %c0_i32 = arith.constant 0 : i32
    %c0_i32_0 = arith.constant 0 : i32
    return %c0_i32, %arg0 : i32, i32
  }
}

</mosaic_0001>

<llo_original>
// kernel: tpu_custom_call.1
$region0: #{tpu_custom_call.1}
  #allocation0 [shape = 'u32[]', space=smem, size = 0x4, offset = 0x4, fixed_abs, tag = 'smem constant byte address 0x4 - core index']
  #allocation1 [shape = 'u32[144,128]{1,0:T(1,128)}', space=vmem, size = 0x12000, scoped, tag = 'internal scratch']
  #allocation2 [shape = 'f32[24,512]{1,0:T(8,128)}', space=vmem, size = 0xc000, scoped, tag = 'scratch operand']
  #allocation3 [shape = 's32[1]{0}', space=sflag, size = 0x4, scoped, tag = 'scoped memory for tpu_custom_call.1']
  #allocation4 [shape = 'u8[512]{0}', space=smem, size = 0x200, scoped, tag = 'prefetched SMEM operand 0']
  %s0 = inlined_call_operand.hbm [shape: s32[4], index: 0, kind: input, shape index: {}]
  %s1 = inlined_call_operand.hbm [shape: s32[1,1024], index: 1, kind: input, shape index: {}]
  %s2 = inlined_call_operand.hbm [shape: f32[3,1024], index: 2, kind: input, shape index: {}]
  %s3 = inlined_call_operand.hbm [shape: f32[24,256], index: 3, kind: input, shape index: {}]
  %s4 = inlined_call_operand.hbm [shape: f32[3,1024], index: 4, kind: output, shape index: {}]
  %s5 = sld [smem:[#allocation0]]
  $region69: #{tpu_custom_call.1} parent=0
    _
  %s7 = ssub.s32 1, %s5
  %s8 = scalar_select 0, %s7, %s5
  %10 = dma.hbm_to_smem %s0, 16, [#allocation4], [#allocation3]
  %11 = dma.done [#allocation3], 16
  %12 = sfence
  $region1: #{tpu_custom_call.1} parent=0
    #allocation5 [shape = 'u8[4096]{0}', space=vmem, size = 0x1000, scoped, tag = 'input window, operand 1']
    #allocation6 [shape = 's32[2]{0}', space=sflag, size = 0x8, scoped, tag = 'scoped memory for tpu_custom_call.1']
    #allocation7 [shape = 's32[2]{0}', space=sflag, size = 0x8, scoped, tag = 'scoped memory for tpu_custom_call.1']
    #allocation8 [shape = 'u8[16384]{0}', space=vmem, size = 0x4000, scoped, tag = 'input window, operand 2']
    #allocation9 [shape = 's32[2]{0}', space=sflag, size = 0x8, scoped, tag = 'scoped memory for tpu_custom_call.1']
    #allocation10 [shape = 'u8[24576]{0}', space=vmem, size = 0x6000, scoped, tag = 'input window, operand 3, single buffered']
    #allocation11 [shape = 'u8[16384]{0}', space=vmem, size = 0x4000, scoped, tag = 'output window, operand 0']
    %13 = vsyncpa [#allocation6], 0
    %s14 = scalar_lea.sflag [#allocation6], 1
    %15 = vsyncpa %s14, 0
    %16 = vsyncpa [#allocation9], 0
    %s17 = scalar_lea.sflag [#allocation9], 1
    %18 = vsyncpa %s17, 0
    %19 = vsyncpa [#allocation7], 0
    %s20 = scalar_lea.sflag [#allocation7], 1
    %21 = vsyncpa %s20, 0
    loop: start=0, step=1, limit=4
    $region2: #{tpu_custom_call.1} parent=1 // loop_pre_header
      _
    $region3: #{tpu_custom_call.1} parent=1 // loop_header
      %s23 = sphi 0, %s27
      %p24 = scmp.ge.s32.totalorder %s23, 4
      %s30 = sphi 0, %s42
      %s31 = sphi 0, %s38
      %s32 = sphi 0, %s30
      %s33 = sphi 0, %s31
      %s34 = sphi 0, %s32
      %s35 = sphi 0, %s33
      %s45 = sphi 0, %s47
      %s48 = sphi 0, %s45
      %s49 = sphi 0, %s48
      %s65 = sphi 0, %s49
      %s71 = sphi 0, %s73
      %s74 = sphi 0, %s71
      %s75 = sphi 0, %s74
      %s91 = sphi 0, %s75
      %s95 = sphi 0, %s95
      %s97 = sphi 0, %s95
      %s98 = sphi 0, %s97
      %s112 = sphi 0, %s98
      %s118 = sphi 0, %s120
      %s121 = sphi 0, %s118
      %s122 = sphi 0, %s121
      %s138 = sphi 0, %s122
    $region4: #{tpu_custom_call.1} parent=1 // loop_header_branch
      %26 = sbr.rel (%p24) target = $region8
    $region5: #{tpu_custom_call.1} parent=1 // loop_body
      %s28 = ssub.s32 %s23, 1
      %s29 = ssub.s32 %s23, 2
      %s36 = sadd.s32 1, %s31
      %p37 = scmp.ge.s32.totalorder %s36, 1
      %s38 = scalar_select %p37, 0, %s36
      %s39 = sadd.s32 1, %s30
      %s40 = scalar_select %p37, %s39, %s30
      %p41 = scmp.ge.s32.totalorder %s40, 2
      %s42 = scalar_select %p41, 0, %s40
      %s43 = ssub.s32 %s30, %s42
      %p44 = scmp.eq.s32.totalorder %s43, 0
      %s46 = sadd.s32 %s45, 1
      %s47 = scalar_select %p44, %s45, %s46
      %p50 = pneg %p44
      %p51 = scmp.eq.s32.totalorder %s23, 1
      %p52 = por %p50, %p51
      %p53 = scmp.ne.s32.totalorder %s45, %s48
      %p54 = scmp.eq.s32.totalorder %s23, 0
      %p55 = por %p53, %p54
      %p56 = scmp.ne.s32.totalorder %s45, %s48
      %p57 = scmp.eq.s32.totalorder %s28, 1
      %p58 = por %p56, %p57
      %p59 = scmp.ne.s32.totalorder %s48, %s49
      %p60 = scmp.eq.s32.totalorder %s28, 0
      %p61 = por %p59, %p60
      %p62 = scmp.ne.s32.totalorder %s48, %s49
      %p63 = scmp.eq.s32.totalorder %s29, 1
      %p64 = por %p62, %p63
      %p66 = scmp.ne.s32.totalorder %s49, %s65
      %p67 = scmp.eq.s32.totalorder %s29, 0
      %p68 = por %p66, %p67
      %s69 = ssub.s32 %s30, %s42
      %p70 = scmp.eq.s32.totalorder %s69, 0
      %s72 = sadd.s32 %s71, 1
      %s73 = scalar_select %p70, %s71, %s72
      %p76 = pneg %p70
      %p77 = scmp.eq.s32.totalorder %s23, 1
      %p78 = por %p76, %p77
      %p79 = scmp.ne.s32.totalorder %s71, %s74
      %p80 = scmp.eq.s32.totalorder %s23, 0
      %p81 = por %p79, %p80
      %p82 = scmp.ne.s32.totalorder %s71, %s74
      %p83 = scmp.eq.s32.totalorder %s28, 1
      %p84 = por %p82, %p83
      %p85 = scmp.ne.s32.totalorder %s74, %s75
      %p86 = scmp.eq.s32.totalorder %s28, 0
      %p87 = por %p85, %p86
      %p88 = scmp.ne.s32.totalorder %s74, %s75
      %p89 = scmp.eq.s32.totalorder %s29, 1
      %p90 = por %p88, %p89
      %p92 = scmp.ne.s32.totalorder %s75, %s91
      %p93 = scmp.eq.s32.totalorder %s29, 0
      %p94 = por %p92, %p93
      %s96 = sadd.s32 %s95, 1
      %p99 = scmp.eq.s32.totalorder %s23, 1
      %p100 = scmp.ne.s32.totalorder %s95, %s97
      %p101 = scmp.eq.s32.totalorder %s23, 0
      %p102 = por %p100, %p101
      %p103 = scmp.ne.s32.totalorder %s95, %s97
      %p104 = scmp.eq.s32.totalorder %s28, 1
      %p105 = por %p103, %p104
      %p106 = scmp.ne.s32.totalorder %s97, %s98
      %p107 = scmp.eq.s32.totalorder %s28, 0
      %p108 = por %p106, %p107
      %p109 = scmp.ne.s32.totalorder %s97, %s98
      %p110 = scmp.eq.s32.totalorder %s29, 1
      %p111 = por %p109, %p110
      %p113 = scmp.ne.s32.totalorder %s98, %s112
      %p114 = scmp.eq.s32.totalorder %s29, 0
      %p115 = por %p113, %p114
      %s116 = ssub.s32 %s30, %s42
      %p117 = scmp.eq.s32.totalorder %s116, 0
      %s119 = sadd.s32 %s118, 1
      %s120 = scalar_select %p117, %s118, %s119
      %p123 = pneg %p117
      %p124 = scmp.eq.s32.totalorder %s23, 1
      %p125 = por %p123, %p124
      %p126 = scmp.ne.s32.totalorder %s118, %s121
      %p127 = scmp.eq.s32.totalorder %s23, 0
      %p128 = por %p126, %p127
      %p129 = scmp.ne.s32.totalorder %s118, %s121
      %p130 = scmp.eq.s32.totalorder %s28, 1
      %p131 = por %p129, %p130
      %p132 = scmp.ne.s32.totalorder %s121, %s122
      %p133 = scmp.eq.s32.totalorder %s28, 0
      %p134 = por %p132, %p133
      %p135 = scmp.ne.s32.totalorder %s121, %s122
      %p136 = scmp.eq.s32.totalorder %s29, 1
      %p137 = por %p135, %p136
      %p139 = scmp.ne.s32.totalorder %s122, %s138
      %p140 = scmp.eq.s32.totalorder %s29, 0
      %p141 = por %p139, %p140
      %p142 = scmp.le.s32.totalorder 1, %s23
      %p143 = scmp.lt.s32.totalorder %s23, 3
      %p144 = pnand %p142, %p143
      %p145 = pneg %p144
      // Predicated region
      $region9: #{tpu_custom_call.1} parent=5 // pred_check
        _
      $region10: #{tpu_custom_call.1} parent=5 // pred_check_branch
        %147 = sbr.rel (%p144) target = $region12
      $region11: #{tpu_custom_call.1} parent=5 // pred_region
        %s148 = ssub.s32 %s23, 1
        // Predicated region
        $region13: #{tpu_custom_call.1} parent=11 // pred_check
          %p149 = pneg %p108
        $region14: #{tpu_custom_call.1} parent=11 // pred_check_branch
          %151 = sbr.rel (%p149) target = $region16
        $region15: #{tpu_custom_call.1} parent=11 // pred_region
          %s153 = ssub.s32 768, 768
          %154 = vsyncadd [#allocation9], %s153
          %s155 = sshll.u32 [#allocation10], 4
          %s156 = int_to_ptr.vmem [resolvable:$true] %s155
          %161 = dma.hbm_to_vmem [thread:$0]  %s3, 768, %s156, [#allocation9], 256, 256, 16
        $region16: #{tpu_custom_call.1} parent=11 // pred_fallthru
          _
      $region12: #{tpu_custom_call.1} parent=5 // pred_fallthru
        _
      %p162 = scmp.lt.s32.totalorder %s23, 2
      // Predicated region
      $region17: #{tpu_custom_call.1} parent=5 // pred_check
        %p163 = pneg %p162
      $region18: #{tpu_custom_call.1} parent=5 // pred_check_branch
        %165 = sbr.rel (%p163) target = $region20
      $region19: #{tpu_custom_call.1} parent=5 // pred_region
        // Predicated region
        $region21: #{tpu_custom_call.1} parent=19 // pred_check
          %p166 = pneg %p55
        $region22: #{tpu_custom_call.1} parent=19 // pred_check_branch
          %168 = sbr.rel (%p166) target = $region24
        $region23: #{tpu_custom_call.1} parent=19 // pred_region
          %s169 = sand.u32 %s45, 1
          %s170 = scalar_lea.sflag [#allocation6], %s169
          %s171 = sand.u32 %s45, 1
          %s172 = smul.addr %s171, 4
          %s173 = scalar_lea.vmem [#allocation5], %s172
          %s174 = smul.u32 4, %s30
          %s176 = ssub.s32 64, 64
          %177 = vsyncadd %s170, %s176
          %s178 = smul.addr %s174, 16
          %s179 = scalar_lea.hbm %s1, %s178
          %s181 = sshll.u32 %s173, 4
          %s182 = int_to_ptr.vmem [resolvable:$true] %s181
          %184 = dma.hbm_to_vmem [thread:$0]  %s179, 64, %s182, %s170
        $region24: #{tpu_custom_call.1} parent=19 // pred_fallthru
          _
        // Predicated region
        $region25: #{tpu_custom_call.1} parent=19 // pred_check
          %p185 = pneg %p81
        $region26: #{tpu_custom_call.1} parent=19 // pred_check_branch
          %187 = sbr.rel (%p185) target = $region28
        $region27: #{tpu_custom_call.1} parent=19 // pred_region
          %s188 = sand.u32 %s23, 1
          %s189 = scalar_lea.sflag [#allocation9], %s188
          %s190 = sand.u32 %s71, 1
          %s191 = smul.addr %s190, 16
          %s192 = scalar_lea.vmem [#allocation8], %s191
          %s193 = smul.u32 4, %s30
          %s195 = ssub.s32 256, 256
          %196 = vsyncadd %s189, %s195
          %s197 = smul.addr %s193, 64
          %s198 = scalar_lea.hbm %s2, %s197
          %s200 = sshll.u32 %s192, 4
          %s201 = int_to_ptr.vmem [resolvable:$true] %s200
          %203 = dma.hbm_to_vmem [thread:$0]  %s198, 256, %s201, %s189
        $region28: #{tpu_custom_call.1} parent=19 // pred_fallthru
          _
      $region20: #{tpu_custom_call.1} parent=5 // pred_fallthru
        _
      %p204 = scmp.le.s32.totalorder 1, %s23
      %p205 = scmp.lt.s32.totalorder %s23, 3
      %p206 = pnand %p204, %p205
      %p207 = pneg %p206
      // Predicated region
      $region29: #{tpu_custom_call.1} parent=5 // pred_check
        _
      $region30: #{tpu_custom_call.1} parent=5 // pred_check_branch
        %209 = sbr.rel (%p206) target = $region32
      $region31: #{tpu_custom_call.1} parent=5 // pred_region
        %s210 = ssub.s32 %s23, 1
        %s211 = sand.u32 %s48, 1
        %s212 = scalar_lea.sflag [#allocation6], %s211
        %s213 = sand.u32 %s48, 1
        %s214 = smul.addr %s213, 4
        %s215 = scalar_lea.vmem [#allocation5], %s214
        // Predicated region
        $region33: #{tpu_custom_call.1} parent=31 // pred_check
          %p216 = pneg %p61
        $region34: #{tpu_custom_call.1} parent=31 // pred_check_branch
          %218 = sbr.rel (%p216) target = $region36
        $region35: #{tpu_custom_call.1} parent=31 // pred_region
          %219 = dma.done %s212, 64
        $region36: #{tpu_custom_call.1} parent=31 // pred_fallthru
          _
        %s220 = sand.u32 %s28, 1
        %s221 = scalar_lea.sflag [#allocation9], %s220
        %s222 = sand.u32 %s74, 1
        %s223 = smul.addr %s222, 16
        %s224 = scalar_lea.vmem [#allocation8], %s223
        // Predicated region
        $region37: #{tpu_custom_call.1} parent=31 // pred_check
          %p225 = pneg %p87
        $region38: #{tpu_custom_call.1} parent=31 // pred_check_branch
          %227 = sbr.rel (%p225) target = $region40
        $region39: #{tpu_custom_call.1} parent=31 // pred_region
          %228 = dma.done %s221, 256
        $region40: #{tpu_custom_call.1} parent=31 // pred_fallthru
          _
        // Predicated region
        $region41: #{tpu_custom_call.1} parent=31 // pred_check
          %p229 = pneg %p108
        $region42: #{tpu_custom_call.1} parent=31 // pred_check_branch
          %231 = sbr.rel (%p229) target = $region44
        $region43: #{tpu_custom_call.1} parent=31 // pred_region
          %232 = dma.done [#allocation9], 768
        $region44: #{tpu_custom_call.1} parent=31 // pred_fallthru
          _
        %s233 = sand.u32 %s48, 1
        %s234 = scalar_lea.sflag [#allocation6], %s233
        %s235 = sand.u32 %s48, 1
        %s236 = smul.addr %s235, 4
        %s237 = scalar_lea.vmem [#allocation5], %s236
        %p238 = pneg %p61
        %p239 = pneg %p58
        %s240 = sand.u32 %s28, 1
        %s241 = scalar_lea.sflag [#allocation9], %s240
        %s242 = sand.u32 %s74, 1
        %s243 = smul.addr %s242, 16
        %s244 = scalar_lea.vmem [#allocation8], %s243
        %p245 = pneg %p87
        %p246 = pneg %p84
        %p247 = pneg %p108
        %p248 = pneg %p105
        %p249 = pneg %p134
        %p250 = pneg %p131
        %s251 = sand.u32 %s121, 1
        %s252 = scalar_lea.sflag [#allocation7], %s251
        %s253 = sand.u32 %s121, 1
        %s254 = smul.addr %s253, 16
        %s255 = scalar_lea.vmem [#allocation11], %s254
        %s256 = smul.u32 4, %s32
        %s257 = smul.u32 4, %s32
        %s258 = smul.u32 4, %s32
        %p259 = scmp.eq.s32.totalorder %s33, 0
        // Predicated region
        $region45: #{tpu_custom_call.1} parent=31 // pred_check
          %p260 = pneg %p259
        $region46: #{tpu_custom_call.1} parent=31 // pred_check_branch
          %262 = sbr.rel (%p260) target = $region48
        $region47: #{tpu_custom_call.1} parent=31 // pred_region
          %263 = vst [vmem:[#allocation2] sm:$0xff] 0.0
          %264 = vst [vmem:[#allocation2 + $0x8] sm:$0xff] 0.0
          %265 = vst [vmem:[#allocation2 + $0x10] sm:$0xff] 0.0
          %266 = vst [vmem:[#allocation2 + $0x18] sm:$0xff] 0.0
          %267 = vst [vmem:[#allocation2 + $0x20] sm:$0xff] 0.0
          %268 = vst [vmem:[#allocation2 + $0x28] sm:$0xff] 0.0
          %269 = vst [vmem:[#allocation2 + $0x30] sm:$0xff] 0.0
          %270 = vst [vmem:[#allocation2 + $0x38] sm:$0xff] 0.0
          %271 = vst [vmem:[#allocation2 + $0x40] sm:$0xff] 0.0
          %272 = vst [vmem:[#allocation2 + $0x48] sm:$0xff] 0.0
          %273 = vst [vmem:[#allocation2 + $0x50] sm:$0xff] 0.0
          %274 = vst [vmem:[#allocation2 + $0x58] sm:$0xff] 0.0
        $region48: #{tpu_custom_call.1} parent=31 // pred_fallthru
          _
        %s275 = smul.u32 %s32, 2
        %s276 = sld [smem:[#allocation4 + %s275]]
        %s277 = sadd.s32 %s275, 1
        %s278 = sld [smem:[#allocation4 + %s277]]
        %s279 = smul.u32 %s33, 256
        %p280 = scmp.le.s32.totalorder %s279, %s278
        %s281 = sadd.s32 %s279, 256
        %p282 = scmp.gt.s32.totalorder %s281, %s276
        %p283 = pnand %p280, %p282
        %p284 = pneg %p283
        // Predicated region
        $region49: #{tpu_custom_call.1} parent=31 // pred_check
          _
        $region50: #{tpu_custom_call.1} parent=31 // pred_check_branch
          %286 = sbr.rel (%p283) target = $region52
        $region51: #{tpu_custom_call.1} parent=31 // pred_region
          %v287 = vld [vmem:[%s215] sm:$0xf]
          %v288 = vstv %s279
          %v289 = vsub.s32 %v287, %v288
          %v290 = vlaneseq
          %v291 = vshrl.u32 %v290, 7
          %v292 = vadd.s32 %v291, 8
          %v293 = vadd.s32 %v291, 16
          %v294 = vadd.s32 %v291, 24
          %v295 = vadd.s32 %v291, 32
          %v296 = vadd.s32 %v291, 40
          %v297 = vadd.s32 %v291, 48
          %v298 = vadd.s32 %v291, 56
          %v299 = vadd.s32 %v291, 64
          %v300 = vadd.s32 %v291, 72
          %v301 = vadd.s32 %v291, 80
          %v302 = vadd.s32 %v291, 88
          %v303 = vadd.s32 %v291, 96
          %v304 = vadd.s32 %v291, 104
          %v305 = vadd.s32 %v291, 112
          %v306 = vadd.s32 %v291, 120
          %v307 = vadd.s32 %v291, 128
          %v308 = vadd.s32 %v291, 136
          %v309 = vadd.s32 %v291, 144
          %v310 = vadd.s32 %v291, 152
          %v311 = vadd.s32 %v291, 160
          %v312 = vadd.s32 %v291, 168
          %v313 = vadd.s32 %v291, 176
          %v314 = vadd.s32 %v291, 184
          %v315 = vadd.s32 %v291, 192
          %v316 = vadd.s32 %v291, 200
          %v317 = vadd.s32 %v291, 208
          %v318 = vadd.s32 %v291, 216
          %v319 = vadd.s32 %v291, 224
          %v320 = vadd.s32 %v291, 232
          %v321 = vadd.s32 %v291, 240
          %v322 = vadd.s32 %v291, 248
          %v323 = vlaneseq
          %v324 = vshrl.u32 %v323, 7
          %v325 = vsub.s32 0, %v324
          %v326 = vrot.slane %v289, %v325
          %v327 = vlaneseq
          %v328 = vshrl.u32 %v327, 7
          %v329 = vsub.s32 1, %v328
          %v330 = vrot.slane %v289, %v329
          %v331 = vlaneseq
          %v332 = vshrl.u32 %v331, 7
          %v333 = vsub.s32 2, %v332
          %v334 = vrot.slane %v289, %v333
          %v335 = vlaneseq
          %v336 = vshrl.u32 %v335, 7
          %v337 = vsub.s32 3, %v336
          %v338 = vrot.slane %v289, %v337
          %vm339 = vcmp.eq.s32.totalorder %v291, %v326
          %vm340 = vcmp.eq.s32.totalorder %v291, %v330
          %vm341 = vcmp.eq.s32.totalorder %v291, %v334
          %vm342 = vcmp.eq.s32.totalorder %v291, %v338
          %vm343 = vcmp.eq.s32.totalorder %v292, %v326
          %vm344 = vcmp.eq.s32.totalorder %v292, %v330
          %vm345 = vcmp.eq.s32.totalorder %v292, %v334
          %vm346 = vcmp.eq.s32.totalorder %v292, %v338
          %vm347 = vcmp.eq.s32.totalorder %v293, %v326
          %vm348 = vcmp.eq.s32.totalorder %v293, %v330
          %vm349 = vcmp.eq.s32.totalorder %v293, %v334
          %vm350 = vcmp.eq.s32.totalorder %v293, %v338
          %vm351 = vcmp.eq.s32.totalorder %v294, %v326
          %vm352 = vcmp.eq.s32.totalorder %v294, %v330
          %vm353 = vcmp.eq.s32.totalorder %v294, %v334
          %vm354 = vcmp.eq.s32.totalorder %v294, %v338
          %vm355 = vcmp.eq.s32.totalorder %v295, %v326
          %vm356 = vcmp.eq.s32.totalorder %v295, %v330
          %vm357 = vcmp.eq.s32.totalorder %v295, %v334
          %vm358 = vcmp.eq.s32.totalorder %v295, %v338
          %vm359 = vcmp.eq.s32.totalorder %v296, %v326
          %vm360 = vcmp.eq.s32.totalorder %v296, %v330
          %vm361 = vcmp.eq.s32.totalorder %v296, %v334
          %vm362 = vcmp.eq.s32.totalorder %v296, %v338
          %vm363 = vcmp.eq.s32.totalorder %v297, %v326
          %vm364 = vcmp.eq.s32.totalorder %v297, %v330
          %vm365 = vcmp.eq.s32.totalorder %v297, %v334
          %vm366 = vcmp.eq.s32.totalorder %v297, %v338
          %vm367 = vcmp.eq.s32.totalorder %v298, %v326
          %vm368 = vcmp.eq.s32.totalorder %v298, %v330
          %vm369 = vcmp.eq.s32.totalorder %v298, %v334
          %vm370 = vcmp.eq.s32.totalorder %v298, %v338
          %vm371 = vcmp.eq.s32.totalorder %v299, %v326
          %vm372 = vcmp.eq.s32.totalorder %v299, %v330
          %vm373 = vcmp.eq.s32.totalorder %v299, %v334
          %vm374 = vcmp.eq.s32.totalorder %v299, %v338
          %vm375 = vcmp.eq.s32.totalorder %v300, %v326
          %vm376 = vcmp.eq.s32.totalorder %v300, %v330
          %vm377 = vcmp.eq.s32.totalorder %v300, %v334
          %vm378 = vcmp.eq.s32.totalorder %v300, %v338
          %vm379 = vcmp.eq.s32.totalorder %v301, %v326
          %vm380 = vcmp.eq.s32.totalorder %v301, %v330
          %vm381 = vcmp.eq.s32.totalorder %v301, %v334
          %vm382 = vcmp.eq.s32.totalorder %v301, %v338
          %vm383 = vcmp.eq.s32.totalorder %v302, %v326
          %vm384 = vcmp.eq.s32.totalorder %v302, %v330
          %vm385 = vcmp.eq.s32.totalorder %v302, %v334
          %vm386 = vcmp.eq.s32.totalorder %v302, %v338
          %vm387 = vcmp.eq.s32.totalorder %v303, %v326
          %vm388 = vcmp.eq.s32.totalorder %v303, %v330
          %vm389 = vcmp.eq.s32.totalorder %v303, %v334
          %vm390 = vcmp.eq.s32.totalorder %v303, %v338
          %vm391 = vcmp.eq.s32.totalorder %v304, %v326
          %vm392 = vcmp.eq.s32.totalorder %v304, %v330
          %vm393 = vcmp.eq.s32.totalorder %v304, %v334
          %vm394 = vcmp.eq.s32.totalorder %v304, %v338
          %vm395 = vcmp.eq.s32.totalorder %v305, %v326
          %vm396 = vcmp.eq.s32.totalorder %v305, %v330
          %vm397 = vcmp.eq.s32.totalorder %v305, %v334
          %vm398 = vcmp.eq.s32.totalorder %v305, %v338
          %vm399 = vcmp.eq.s32.totalorder %v306, %v326
          %vm400 = vcmp.eq.s32.totalorder %v306, %v330
          %vm401 = vcmp.eq.s32.totalorder %v306, %v334
          %vm402 = vcmp.eq.s32.totalorder %v306, %v338
          %vm403 = vcmp.eq.s32.totalorder %v307, %v326
          %vm404 = vcmp.eq.s32.totalorder %v307, %v330
          %vm405 = vcmp.eq.s32.totalorder %v307, %v334
          %vm406 = vcmp.eq.s32.totalorder %v307, %v338
          %vm407 = vcmp.eq.s32.totalorder %v308, %v326
          %vm408 = vcmp.eq.s32.totalorder %v308, %v330
          %vm409 = vcmp.eq.s32.totalorder %v308, %v334
          %vm410 = vcmp.eq.s32.totalorder %v308, %v338
          %vm411 = vcmp.eq.s32.totalorder %v309, %v326
          %vm412 = vcmp.eq.s32.totalorder %v309, %v330
          %vm413 = vcmp.eq.s32.totalorder %v309, %v334
          %vm414 = vcmp.eq.s32.totalorder %v309, %v338
          %vm415 = vcmp.eq.s32.totalorder %v310, %v326
          %vm416 = vcmp.eq.s32.totalorder %v310, %v330
          %vm417 = vcmp.eq.s32.totalorder %v310, %v334
          %vm418 = vcmp.eq.s32.totalorder %v310, %v338
          %vm419 = vcmp.eq.s32.totalorder %v311, %v326
          %vm420 = vcmp.eq.s32.totalorder %v311, %v330
          %vm421 = vcmp.eq.s32.totalorder %v311, %v334
          %vm422 = vcmp.eq.s32.totalorder %v311, %v338
          %vm423 = vcmp.eq.s32.totalorder %v312, %v326
          %vm424 = vcmp.eq.s32.totalorder %v312, %v330
          %vm425 = vcmp.eq.s32.totalorder %v312, %v334
          %vm426 = vcmp.eq.s32.totalorder %v312, %v338
          %vm427 = vcmp.eq.s32.totalorder %v313, %v326
          %vm428 = vcmp.eq.s32.totalorder %v313, %v330
          %vm429 = vcmp.eq.s32.totalorder %v313, %v334
          %vm430 = vcmp.eq.s32.totalorder %v313, %v338
          %vm431 = vcmp.eq.s32.totalorder %v314, %v326
          %vm432 = vcmp.eq.s32.totalorder %v314, %v330
          %vm433 = vcmp.eq.s32.totalorder %v314, %v334
          %vm434 = vcmp.eq.s32.totalorder %v314, %v338
          %vm435 = vcmp.eq.s32.totalorder %v315, %v326
          %vm436 = vcmp.eq.s32.totalorder %v315, %v330
          %vm437 = vcmp.eq.s32.totalorder %v315, %v334
          %vm438 = vcmp.eq.s32.totalorder %v315, %v338
          %vm439 = vcmp.eq.s32.totalorder %v316, %v326
          %vm440 = vcmp.eq.s32.totalorder %v316, %v330
          %vm441 = vcmp.eq.s32.totalorder %v316, %v334
          %vm442 = vcmp.eq.s32.totalorder %v316, %v338
          %vm443 = vcmp.eq.s32.totalorder %v317, %v326
          %vm444 = vcmp.eq.s32.totalorder %v317, %v330
          %vm445 = vcmp.eq.s32.totalorder %v317, %v334
          %vm446 = vcmp.eq.s32.totalorder %v317, %v338
          %vm447 = vcmp.eq.s32.totalorder %v318, %v326
          %vm448 = vcmp.eq.s32.totalorder %v318, %v330
          %vm449 = vcmp.eq.s32.totalorder %v318, %v334
          %vm450 = vcmp.eq.s32.totalorder %v318, %v338
          %vm451 = vcmp.eq.s32.totalorder %v319, %v326
          %vm452 = vcmp.eq.s32.totalorder %v319, %v330
          %vm453 = vcmp.eq.s32.totalorder %v319, %v334
          %vm454 = vcmp.eq.s32.totalorder %v319, %v338
          %vm455 = vcmp.eq.s32.totalorder %v320, %v326
          %vm456 = vcmp.eq.s32.totalorder %v320, %v330
          %vm457 = vcmp.eq.s32.totalorder %v320, %v334
          %vm458 = vcmp.eq.s32.totalorder %v320, %v338
          %vm459 = vcmp.eq.s32.totalorder %v321, %v326
          %vm460 = vcmp.eq.s32.totalorder %v321, %v330
          %vm461 = vcmp.eq.s32.totalorder %v321, %v334
          %vm462 = vcmp.eq.s32.totalorder %v321, %v338
          %vm463 = vcmp.eq.s32.totalorder %v322, %v326
          %vm464 = vcmp.eq.s32.totalorder %v322, %v330
          %vm465 = vcmp.eq.s32.totalorder %v322, %v334
          %vm466 = vcmp.eq.s32.totalorder %v322, %v338
          %v467 = vsel %vm339, 1, 0
          %v468 = vsel %vm340, 1, 0
          %v469 = vsel %vm341, 1, 0
          %v470 = vsel %vm342, 1, 0
          %v471 = vsel %vm343, 1, 0
          %v472 = vsel %vm344, 1, 0
          %v473 = vsel %vm345, 1, 0
          %v474 = vsel %vm346, 1, 0
          %v475 = vsel %vm347, 1, 0
          %v476 = vsel %vm348, 1, 0
          %v477 = vsel %vm349, 1, 0
          %v478 = vsel %vm350, 1, 0
          %v479 = vsel %vm351, 1, 0
          %v480 = vsel %vm352, 1, 0
          %v481 = vsel %vm353, 1, 0
          %v482 = vsel %vm354, 1, 0
          %v483 = vsel %vm355, 1, 0
          %v484 = vsel %vm356, 1, 0
          %v485 = vsel %vm357, 1, 0
          %v486 = vsel %vm358, 1, 0
          %v487 = vsel %vm359, 1, 0
          %v488 = vsel %vm360, 1, 0
          %v489 = vsel %vm361, 1, 0
          %v490 = vsel %vm362, 1, 0
          %v491 = vsel %vm363, 1, 0
          %v492 = vsel %vm364, 1, 0
          %v493 = vsel %vm365, 1, 0
          %v494 = vsel %vm366, 1, 0
          %v495 = vsel %vm367, 1, 0
          %v496 = vsel %vm368, 1, 0
          %v497 = vsel %vm369, 1, 0
          %v498 = vsel %vm370, 1, 0
          %v499 = vsel %vm371, 1, 0
          %v500 = vsel %vm372, 1, 0
          %v501 = vsel %vm373, 1, 0
          %v502 = vsel %vm374, 1, 0
          %v503 = vsel %vm375, 1, 0
          %v504 = vsel %vm376, 1, 0
          %v505 = vsel %vm377, 1, 0
          %v506 = vsel %vm378, 1, 0
          %v507 = vsel %vm379, 1, 0
          %v508 = vsel %vm380, 1, 0
          %v509 = vsel %vm381, 1, 0
          %v510 = vsel %vm382, 1, 0
          %v511 = vsel %vm383, 1, 0
          %v512 = vsel %vm384, 1, 0
          %v513 = vsel %vm385, 1, 0
          %v514 = vsel %vm386, 1, 0
          %v515 = vsel %vm387, 1, 0
          %v516 = vsel %vm388, 1, 0
          %v517 = vsel %vm389, 1, 0
          %v518 = vsel %vm390, 1, 0
          %v519 = vsel %vm391, 1, 0
          %v520 = vsel %vm392, 1, 0
          %v521 = vsel %vm393, 1, 0
          %v522 = vsel %vm394, 1, 0
          %v523 = vsel %vm395, 1, 0
          %v524 = vsel %vm396, 1, 0
          %v525 = vsel %vm397, 1, 0
          %v526 = vsel %vm398, 1, 0
          %v527 = vsel %vm399, 1, 0
          %v528 = vsel %vm400, 1, 0
          %v529 = vsel %vm401, 1, 0
          %v530 = vsel %vm402, 1, 0
          %v531 = vsel %vm403, 1, 0
          %v532 = vsel %vm404, 1, 0
          %v533 = vsel %vm405, 1, 0
          %v534 = vsel %vm406, 1, 0
          %v535 = vsel %vm407, 1, 0
          %v536 = vsel %vm408, 1, 0
          %v537 = vsel %vm409, 1, 0
          %v538 = vsel %vm410, 1, 0
          %v539 = vsel %vm411, 1, 0
          %v540 = vsel %vm412, 1, 0
          %v541 = vsel %vm413, 1, 0
          %v542 = vsel %vm414, 1, 0
          %v543 = vsel %vm415, 1, 0
          %v544 = vsel %vm416, 1, 0
          %v545 = vsel %vm417, 1, 0
          %v546 = vsel %vm418, 1, 0
          %v547 = vsel %vm419, 1, 0
          %v548 = vsel %vm420, 1, 0
          %v549 = vsel %vm421, 1, 0
          %v550 = vsel %vm422, 1, 0
          %v551 = vsel %vm423, 1, 0
          %v552 = vsel %vm424, 1, 0
          %v553 = vsel %vm425, 1, 0
          %v554 = vsel %vm426, 1, 0
          %v555 = vsel %vm427, 1, 0
          %v556 = vsel %vm428, 1, 0
          %v557 = vsel %vm429, 1, 0
          %v558 = vsel %vm430, 1, 0
          %v559 = vsel %vm431, 1, 0
          %v560 = vsel %vm432, 1, 0
          %v561 = vsel %vm433, 1, 0
          %v562 = vsel %vm434, 1, 0
          %v563 = vsel %vm435, 1, 0
          %v564 = vsel %vm436, 1, 0
          %v565 = vsel %vm437, 1, 0
          %v566 = vsel %vm438, 1, 0
          %v567 = vsel %vm439, 1, 0
          %v568 = vsel %vm440, 1, 0
          %v569 = vsel %vm441, 1, 0
          %v570 = vsel %vm442, 1, 0
          %v571 = vsel %vm443, 1, 0
          %v572 = vsel %vm444, 1, 0
          %v573 = vsel %vm445, 1, 0
          %v574 = vsel %vm446, 1, 0
          %v575 = vsel %vm447, 1, 0
          %v576 = vsel %vm448, 1, 0
          %v577 = vsel %vm449, 1, 0
          %v578 = vsel %vm450, 1, 0
          %v579 = vsel %vm451, 1, 0
          %v580 = vsel %vm452, 1, 0
          %v581 = vsel %vm453, 1, 0
          %v582 = vsel %vm454, 1, 0
          %v583 = vsel %vm455, 1, 0
          %v584 = vsel %vm456, 1, 0
          %v585 = vsel %vm457, 1, 0
          %v586 = vsel %vm458, 1, 0
          %v587 = vsel %vm459, 1, 0
          %v588 = vsel %vm460, 1, 0
          %v589 = vsel %vm461, 1, 0
          %v590 = vsel %vm462, 1, 0
          %v591 = vsel %vm463, 1, 0
          %v592 = vsel %vm464, 1, 0
          %v593 = vsel %vm465, 1, 0
          %v594 = vsel %vm466, 1, 0
          %v595 = vcvt.s32.f32 %v467
          %v596 = vcvt.s32.f32 %v468
          %v597 = vcvt.s32.f32 %v469
          %v598 = vcvt.s32.f32 %v470
          %v599 = vcvt.s32.f32 %v471
          %v600 = vcvt.s32.f32 %v472
          %v601 = vcvt.s32.f32 %v473
          %v602 = vcvt.s32.f32 %v474
          %v603 = vcvt.s32.f32 %v475
          %v604 = vcvt.s32.f32 %v476
          %v605 = vcvt.s32.f32 %v477
          %v606 = vcvt.s32.f32 %v478
          %v607 = vcvt.s32.f32 %v479
          %v608 = vcvt.s32.f32 %v480
          %v609 = vcvt.s32.f32 %v481
          %v610 = vcvt.s32.f32 %v482
          %v611 = vcvt.s32.f32 %v483
          %v612 = vcvt.s32.f32 %v484
          %v613 = vcvt.s32.f32 %v485
          %v614 = vcvt.s32.f32 %v486
          %v615 = vcvt.s32.f32 %v487
          %v616 = vcvt.s32.f32 %v488
          %v617 = vcvt.s32.f32 %v489
          %v618 = vcvt.s32.f32 %v490
          %v619 = vcvt.s32.f32 %v491
          %v620 = vcvt.s32.f32 %v492
          %v621 = vcvt.s32.f32 %v493
          %v622 = vcvt.s32.f32 %v494
          %v623 = vcvt.s32.f32 %v495
          %v624 = vcvt.s32.f32 %v496
          %v625 = vcvt.s32.f32 %v497
          %v626 = vcvt.s32.f32 %v498
          %v627 = vcvt.s32.f32 %v499
          %v628 = vcvt.s32.f32 %v500
          %v629 = vcvt.s32.f32 %v501
          %v630 = vcvt.s32.f32 %v502
          %v631 = vcvt.s32.f32 %v503
          %v632 = vcvt.s32.f32 %v504
          %v633 = vcvt.s32.f32 %v505
          %v634 = vcvt.s32.f32 %v506
          %v635 = vcvt.s32.f32 %v507
          %v636 = vcvt.s32.f32 %v508
          %v637 = vcvt.s32.f32 %v509
          %v638 = vcvt.s32.f32 %v510
          %v639 = vcvt.s32.f32 %v511
          %v640 = vcvt.s32.f32 %v512
          %v641 = vcvt.s32.f32 %v513
          %v642 = vcvt.s32.f32 %v514
          %v643 = vcvt.s32.f32 %v515
          %v644 = vcvt.s32.f32 %v516
          %v645 = vcvt.s32.f32 %v517
          %v646 = vcvt.s32.f32 %v518
          %v647 = vcvt.s32.f32 %v519
          %v648 = vcvt.s32.f32 %v520
          %v649 = vcvt.s32.f32 %v521
          %v650 = vcvt.s32.f32 %v522
          %v651 = vcvt.s32.f32 %v523
          %v652 = vcvt.s32.f32 %v524
          %v653 = vcvt.s32.f32 %v525
          %v654 = vcvt.s32.f32 %v526
          %v655 = vcvt.s32.f32 %v527
          %v656 = vcvt.s32.f32 %v528
          %v657 = vcvt.s32.f32 %v529
          %v658 = vcvt.s32.f32 %v530
          %v659 = vcvt.s32.f32 %v531
          %v660 = vcvt.s32.f32 %v532
          %v661 = vcvt.s32.f32 %v533
          %v662 = vcvt.s32.f32 %v534
          %v663 = vcvt.s32.f32 %v535
          %v664 = vcvt.s32.f32 %v536
          %v665 = vcvt.s32.f32 %v537
          %v666 = vcvt.s32.f32 %v538
          %v667 = vcvt.s32.f32 %v539
          %v668 = vcvt.s32.f32 %v540
          %v669 = vcvt.s32.f32 %v541
          %v670 = vcvt.s32.f32 %v542
          %v671 = vcvt.s32.f32 %v543
          %v672 = vcvt.s32.f32 %v544
          %v673 = vcvt.s32.f32 %v545
          %v674 = vcvt.s32.f32 %v546
          %v675 = vcvt.s32.f32 %v547
          %v676 = vcvt.s32.f32 %v548
          %v677 = vcvt.s32.f32 %v549
          %v678 = vcvt.s32.f32 %v550
          %v679 = vcvt.s32.f32 %v551
          %v680 = vcvt.s32.f32 %v552
          %v681 = vcvt.s32.f32 %v553
          %v682 = vcvt.s32.f32 %v554
          %v683 = vcvt.s32.f32 %v555
          %v684 = vcvt.s32.f32 %v556
          %v685 = vcvt.s32.f32 %v557
          %v686 = vcvt.s32.f32 %v558
          %v687 = vcvt.s32.f32 %v559
          %v688 = vcvt.s32.f32 %v560
          %v689 = vcvt.s32.f32 %v561
          %v690 = vcvt.s32.f32 %v562
          %v691 = vcvt.s32.f32 %v563
          %v692 = vcvt.s32.f32 %v564
          %v693 = vcvt.s32.f32 %v565
          %v694 = vcvt.s32.f32 %v566
          %v695 = vcvt.s32.f32 %v567
          %v696 = vcvt.s32.f32 %v568
          %v697 = vcvt.s32.f32 %v569
          %v698 = vcvt.s32.f32 %v570
          %v699 = vcvt.s32.f32 %v571
          %v700 = vcvt.s32.f32 %v572
          %v701 = vcvt.s32.f32 %v573
          %v702 = vcvt.s32.f32 %v574
          %v703 = vcvt.s32.f32 %v575
          %v704 = vcvt.s32.f32 %v576
          %v705 = vcvt.s32.f32 %v577
          %v706 = vcvt.s32.f32 %v578
          %v707 = vcvt.s32.f32 %v579
          %v708 = vcvt.s32.f32 %v580
          %v709 = vcvt.s32.f32 %v581
          %v710 = vcvt.s32.f32 %v582
          %v711 = vcvt.s32.f32 %v583
          %v712 = vcvt.s32.f32 %v584
          %v713 = vcvt.s32.f32 %v585
          %v714 = vcvt.s32.f32 %v586
          %v715 = vcvt.s32.f32 %v587
          %v716 = vcvt.s32.f32 %v588
          %v717 = vcvt.s32.f32 %v589
          %v718 = vcvt.s32.f32 %v590
          %v719 = vcvt.s32.f32 %v591
          %v720 = vcvt.s32.f32 %v592
          %v721 = vcvt.s32.f32 %v593
          %v722 = vcvt.s32.f32 %v594
          %s723 = sshra.s32 %s279, 7
          %s724 = sand.u32 %s279, 127
          %s725 = smul.addr %s723, 8
          %s726 = scalar_lea.vmem [#allocation10], %s725
          %v727 = vld [vmem:[%s726] sm:$0xff]
          %v728 = vld [vmem:[%s726 + $0x8] sm:$0xff]
          %v729 = vld [vmem:[%s726 + $0x10] sm:$0xff]
          %v730 = vld [vmem:[%s726 + $0x18] sm:$0xff]
          %v731 = vld [vmem:[%s726 + $0x20] sm:$0xff]
          %v732 = vld [vmem:[%s726 + $0x28] sm:$0xff]
          %v733 = vld [vmem:[#allocation2] sm:$0xff]
          %v734 = vld [vmem:[#allocation2 + $0x8] sm:$0xff]
          %v735 = vld [vmem:[#allocation2 + $0x10] sm:$0xff]
          %v736 = vld [vmem:[#allocation2 + $0x18] sm:$0xff]
          %v737 = vld [vmem:[#allocation2 + $0x20] sm:$0xff]
          %v738 = vld [vmem:[#allocation2 + $0x28] sm:$0xff]
          %v739 = vld [vmem:[#allocation2 + $0x30] sm:$0xff]
          %v740 = vld [vmem:[#allocation2 + $0x38] sm:$0xff]
          %v741 = vld [vmem:[#allocation2 + $0x40] sm:$0xff]
          %v742 = vld [vmem:[#allocation2 + $0x48] sm:$0xff]
          %v743 = vld [vmem:[#allocation2 + $0x50] sm:$0xff]
          %v744 = vld [vmem:[#allocation2 + $0x58] sm:$0xff]
          %745 = vmatprep.subr.mxu0 %v656
          %746 = vmatpush1.msra.mxu0 %v655
          %747 = vmatprep.subr.mxu0 %v652
          %748 = vmatpush1.msra.mxu0 %v651
          %749 = vmatprep.subr.mxu0 %v648
          %750 = vmatpush1.msra.mxu0 %v647
          %751 = vmatprep.subr.mxu0 %v644
          %752 = vmatpush1.msra.mxu0 %v643
          %753 = vmatprep.subr.mxu0 %v640
          %754 = vmatpush1.msra.mxu0 %v639
          %755 = vmatprep.subr.mxu0 %v636
          %756 = vmatpush1.msra.mxu0 %v635
          %757 = vmatprep.subr.mxu0 %v632
          %758 = vmatpush1.msra.mxu0 %v631
          %759 = vmatprep.subr.mxu0 %v628
          %760 = vmatpush1.msra.mxu0 %v627
          %761 = vmatprep.subr.mxu0 %v624
          %762 = vmatpush1.msra.mxu0 %v623
          %763 = vmatprep.subr.mxu0 %v620
          %764 = vmatpush1.msra.mxu0 %v619
          %765 = vmatprep.subr.mxu0 %v616
          %766 = vmatpush1.msra.mxu0 %v615
          %767 = vmatprep.subr.mxu0 %v612
          %768 = vmatpush1.msra.mxu0 %v611
          %769 = vmatprep.subr.mxu0 %v608
          %770 = vmatpush1.msra.mxu0 %v607
          %771 = vmatprep.subr.mxu0 %v604
          %772 = vmatpush1.msra.mxu0 %v603
          %773 = vmatprep.subr.mxu0 %v600
          %774 = vmatpush1.msra.mxu0 %v599
          %775 = vmatprep.subr.mxu0 %v596
          %776 = vmatpush1.msra.mxu0 %v595
          %777 = vmatprep.subr.mxu0 %v720
          %778 = vmatpush2.msra.mxu0 %v719
          %779 = vmatprep.subr.mxu0 %v716
          %780 = vmatpush2.msra.mxu0 %v715
          %781 = vmatprep.subr.mxu0 %v712
          %782 = vmatpush2.msra.mxu0 %v711
          %783 = vmatprep.subr.mxu0 %v708
          %784 = vmatpush2.msra.mxu0 %v707
          %785 = vmatprep.subr.mxu0 %v704
          %786 = vmatpush2.msra.mxu0 %v703
          %787 = vmatprep.subr.mxu0 %v700
          %788 = vmatpush2.msra.mxu0 %v699
          %789 = vmatprep.subr.mxu0 %v696
          %790 = vmatpush2.msra.mxu0 %v695
          %791 = vmatprep.subr.mxu0 %v692
          %792 = vmatpush2.msra.mxu0 %v691
          %793 = vmatprep.subr.mxu0 %v688
          %794 = vmatpush2.msra.mxu0 %v687
          %795 = vmatprep.subr.mxu0 %v684
          %796 = vmatpush2.msra.mxu0 %v683
          %797 = vmatprep.subr.mxu0 %v680
          %798 = vmatpush2.msra.mxu0 %v679
          %799 = vmatprep.subr.mxu0 %v676
          %800 = vmatpush2.msra.mxu0 %v675
          %801 = vmatprep.subr.mxu0 %v672
          %802 = vmatpush2.msra.mxu0 %v671
          %803 = vmatprep.subr.mxu0 %v668
          %804 = vmatpush2.msra.mxu0 %v667
          %805 = vmatprep.subr.mxu0 %v664
          %806 = vmatpush2.msra.mxu0 %v663
          %807 = vmatprep.subr.mxu0 %v660
          %808 = vmatpush2.msra.mxu0 %v659
          %809 = vmatprep.mubr.f32.mxu0 %v728
          %810 = vmatmul.mubr.f32.gmra.mxu0 %v727
          %v811 = vpop.f32.mrf.mxu0
          %v812 = vadd.f32 0.0, %v811
          %v813 = vpop.f32.mrf.mxu0
          %v814 = vadd.f32 0.0, %v813
          %815 = vmatprep.mubr.f32.mxu0 %v730
          %816 = vmatmul.mubr.f32.gmra.mxu0 %v729
          %v817 = vpop.f32.mrf.mxu0
          %v818 = vadd.f32 0.0, %v817
          %v819 = vpop.f32.mrf.mxu0
          %v820 = vadd.f32 0.0, %v819
          %821 = vmatprep.mubr.f32.mxu0 %v732
          %822 = vmatmul.mubr.f32.gmra.mxu0 %v731
          %v823 = vpop.f32.mrf.mxu0
          %v824 = vadd.f32 0.0, %v823
          %v825 = vpop.f32.mrf.mxu0
          %v826 = vadd.f32 0.0, %v825
          %827 = vdwg.mxu0
          %828 = vmatprep.subr.mxu0 %v658
          %829 = vmatpush1.msra.mxu0 %v657
          %830 = vmatprep.subr.mxu0 %v654
          %831 = vmatpush1.msra.mxu0 %v653
          %832 = vmatprep.subr.mxu0 %v650
          %833 = vmatpush1.msra.mxu0 %v649
          %834 = vmatprep.subr.mxu0 %v646
          %835 = vmatpush1.msra.mxu0 %v645
          %836 = vmatprep.subr.mxu0 %v642
          %837 = vmatpush1.msra.mxu0 %v641
          %838 = vmatprep.subr.mxu0 %v638
          %839 = vmatpush1.msra.mxu0 %v637
          %840 = vmatprep.subr.mxu0 %v634
          %841 = vmatpush1.msra.mxu0 %v633
          %842 = vmatprep.subr.mxu0 %v630
          %843 = vmatpush1.msra.mxu0 %v629
          %844 = vmatprep.subr.mxu0 %v626
          %845 = vmatpush1.msra.mxu0 %v625
          %846 = vmatprep.subr.mxu0 %v622
          %847 = vmatpush1.msra.mxu0 %v621
          %848 = vmatprep.subr.mxu0 %v618
          %849 = vmatpush1.msra.mxu0 %v617
          %850 = vmatprep.subr.mxu0 %v614
          %851 = vmatpush1.msra.mxu0 %v613
          %852 = vmatprep.subr.mxu0 %v610
          %853 = vmatpush1.msra.mxu0 %v609
          %854 = vmatprep.subr.mxu0 %v606
          %855 = vmatpush1.msra.mxu0 %v605
          %856 = vmatprep.subr.mxu0 %v602
          %857 = vmatpush1.msra.mxu0 %v601
          %858 = vmatprep.subr.mxu0 %v598
          %859 = vmatpush1.msra.mxu0 %v597
          %860 = vmatprep.subr.mxu0 %v722
          %861 = vmatpush2.msra.mxu0 %v721
          %862 = vmatprep.subr.mxu0 %v718
          %863 = vmatpush2.msra.mxu0 %v717
          %864 = vmatprep.subr.mxu0 %v714
          %865 = vmatpush2.msra.mxu0 %v713
          %866 = vmatprep.subr.mxu0 %v710
          %867 = vmatpush2.msra.mxu0 %v709
          %868 = vmatprep.subr.mxu0 %v706
          %869 = vmatpush2.msra.mxu0 %v705
          %870 = vmatprep.subr.mxu0 %v702
          %871 = vmatpush2.msra.mxu0 %v701
          %872 = vmatprep.subr.mxu0 %v698
          %873 = vmatpush2.msra.mxu0 %v697
          %874 = vmatprep.subr.mxu0 %v694
          %875 = vmatpush2.msra.mxu0 %v693
          %876 = vmatprep.subr.mxu0 %v690
          %877 = vmatpush2.msra.mxu0 %v689
          %878 = vmatprep.subr.mxu0 %v686
          %879 = vmatpush2.msra.mxu0 %v685
          %880 = vmatprep.subr.mxu0 %v682
          %881 = vmatpush2.msra.mxu0 %v681
          %882 = vmatprep.subr.mxu0 %v678
          %883 = vmatpush2.msra.mxu0 %v677
          %884 = vmatprep.subr.mxu0 %v674
          %885 = vmatpush2.msra.mxu0 %v673
          %886 = vmatprep.subr.mxu0 %v670
          %887 = vmatpush2.msra.mxu0 %v669
          %888 = vmatprep.subr.mxu0 %v666
          %889 = vmatpush2.msra.mxu0 %v665
          %890 = vmatprep.subr.mxu0 %v662
          %891 = vmatpush2.msra.mxu0 %v661
          %892 = vmatprep.mubr.f32.mxu0 %v728
          %893 = vmatmul.mubr.f32.gmra.mxu0 %v727
          %v894 = vpop.f32.mrf.mxu0
          %v895 = vadd.f32 0.0, %v894
          %v896 = vpop.f32.mrf.mxu0
          %v897 = vadd.f32 0.0, %v896
          %898 = vmatprep.mubr.f32.mxu0 %v730
          %899 = vmatmul.mubr.f32.gmra.mxu0 %v729
          %v900 = vpop.f32.mrf.mxu0
          %v901 = vadd.f32 0.0, %v900
          %v902 = vpop.f32.mrf.mxu0
          %v903 = vadd.f32 0.0, %v902
          %904 = vmatprep.mubr.f32.mxu0 %v732
          %905 = vmatmul.mubr.f32.gmra.mxu0 %v731
          %v906 = vpop.f32.mrf.mxu0
          %v907 = vadd.f32 0.0, %v906
          %v908 = vpop.f32.mrf.mxu0
          %v909 = vadd.f32 0.0, %v908
          %910 = vdwg.mxu0
          %v911 = vadd.f32 %v733, %v812
          %v912 = vadd.f32 %v734, %v814
          %v913 = vadd.f32 %v735, %v895
          %v914 = vadd.f32 %v736, %v897
          %v915 = vadd.f32 %v737, %v818
          %v916 = vadd.f32 %v738, %v820
          %v917 = vadd.f32 %v739, %v901
          %v918 = vadd.f32 %v740, %v903
          %v919 = vadd.f32 %v741, %v824
          %v920 = vadd.f32 %v742, %v826
          %v921 = vadd.f32 %v743, %v907
          %v922 = vadd.f32 %v744, %v909
          %923 = vst [vmem:[#allocation2] sm:$0xff] %v911
          %924 = vst [vmem:[#allocation2 + $0x8] sm:$0xff] %v912
          %925 = vst [vmem:[#allocation2 + $0x10] sm:$0xff] %v913
          %926 = vst [vmem:[#allocation2 + $0x18] sm:$0xff] %v914
          %927 = vst [vmem:[#allocation2 + $0x20] sm:$0xff] %v915
          %928 = vst [vmem:[#allocation2 + $0x28] sm:$0xff] %v916
          %929 = vst [vmem:[#allocation2 + $0x30] sm:$0xff] %v917
          %930 = vst [vmem:[#allocation2 + $0x38] sm:$0xff] %v918
          %931 = vst [vmem:[#allocation2 + $0x40] sm:$0xff] %v919
          %932 = vst [vmem:[#allocation2 + $0x48] sm:$0xff] %v920
          %933 = vst [vmem:[#allocation2 + $0x50] sm:$0xff] %v921
          %934 = vst [vmem:[#allocation2 + $0x58] sm:$0xff] %v922
        $region52: #{tpu_custom_call.1} parent=31 // pred_fallthru
          _
        // Predicated region
        $region53: #{tpu_custom_call.1} parent=31 // pred_check
          %p935 = pneg %p259
        $region54: #{tpu_custom_call.1} parent=31 // pred_check_branch
          %937 = sbr.rel (%p935) target = $region56
        $region55: #{tpu_custom_call.1} parent=31 // pred_region
          %v938 = vld [vmem:[%s224] sm:$0x77]
          %v939 = vld [vmem:[%s224 + $0x8] sm:$0x77]
          %v940 = vld [vmem:[#allocation2] sm:$0xff]
          %v941 = vld [vmem:[#allocation2 + $0x8] sm:$0xff]
          %v942 = vld [vmem:[#allocation2 + $0x10] sm:$0xff]
          %v943 = vld [vmem:[#allocation2 + $0x18] sm:$0xff]
          %v944 = vld [vmem:[#allocation2 + $0x20] sm:$0xff]
          %v945 = vld [vmem:[#allocation2 + $0x28] sm:$0xff]
          %v946 = vld [vmem:[#allocation2 + $0x30] sm:$0xff]
          %v947 = vld [vmem:[#allocation2 + $0x38] sm:$0xff]
          %v948 = vld [vmem:[#allocation2 + $0x40] sm:$0xff]
          %v949 = vld [vmem:[#allocation2 + $0x48] sm:$0xff]
          %v950 = vld [vmem:[#allocation2 + $0x50] sm:$0xff]
          %v951 = vld [vmem:[#allocation2 + $0x58] sm:$0xff]
          %v954 = vlaneseq
          %v955 = vshrl.u32 %v954, 7
          %v956 = vsub.s32 0, %v955
          %v957 = vrot.slane %v938, %v956
          %v958 = vlaneseq
          %v959 = vshrl.u32 %v958, 7
          %v960 = vsub.s32 4, %v959
          %v961 = vrot.slane %v938, %v960
          %v962 = vlaneseq
          %v963 = vshrl.u32 %v962, 7
          %v964 = vsub.s32 0, %v963
          %v965 = vrot.slane %v939, %v964
          %v966 = vlaneseq
          %v967 = vshrl.u32 %v966, 7
          %v968 = vsub.s32 4, %v967
          %v969 = vrot.slane %v939, %v968
          %v974 = vlaneseq
          %v975 = vshrl.u32 %v974, 7
          %v976 = vsub.s32 0, %v975
          %v977 = vrot.slane %v957, %v976
          %v978 = vlaneseq
          %v979 = vshrl.u32 %v978, 7
          %v980 = vsub.s32 0, %v979
          %v981 = vrot.slane %v961, %v980
          %v982 = vlaneseq
          %v983 = vshrl.u32 %v982, 7
          %v984 = vsub.s32 0, %v983
          %v985 = vrot.slane %v965, %v984
          %v986 = vlaneseq
          %v987 = vshrl.u32 %v986, 7
          %v988 = vsub.s32 0, %v987
          %v989 = vrot.slane %v969, %v988
          %v990 = vmul.f32 %v977, %v940
          %v991 = vmul.f32 %v981, %v941
          %v992 = vmul.f32 %v985, %v942
          %v993 = vmul.f32 %v989, %v943
          %v994 = vlaneseq
          %v995 = vshrl.u32 %v994, 7
          %v996 = vsub.s32 1, %v995
          %v997 = vrot.slane %v938, %v996
          %v998 = vlaneseq
          %v999 = vshrl.u32 %v998, 7
          %v1000 = vsub.s32 5, %v999
          %v1001 = vrot.slane %v938, %v1000
          %v1002 = vlaneseq
          %v1003 = vshrl.u32 %v1002, 7
          %v1004 = vsub.s32 1, %v1003
          %v1005 = vrot.slane %v939, %v1004
          %v1006 = vlaneseq
          %v1007 = vshrl.u32 %v1006, 7
          %v1008 = vsub.s32 5, %v1007
          %v1009 = vrot.slane %v939, %v1008
          %v1014 = vlaneseq
          %v1015 = vshrl.u32 %v1014, 7
          %v1016 = vsub.s32 1, %v1015
          %v1017 = vrot.slane %v997, %v1016
          %v1018 = vlaneseq
          %v1019 = vshrl.u32 %v1018, 7
          %v1020 = vsub.s32 1, %v1019
          %v1021 = vrot.slane %v1001, %v1020
          %v1022 = vlaneseq
          %v1023 = vshrl.u32 %v1022, 7
          %v1024 = vsub.s32 1, %v1023
          %v1025 = vrot.slane %v1005, %v1024
          %v1026 = vlaneseq
          %v1027 = vshrl.u32 %v1026, 7
          %v1028 = vsub.s32 1, %v1027
          %v1029 = vrot.slane %v1009, %v1028
          %v1030 = vmul.f32 %v1017, %v944
          %v1031 = vmul.f32 %v1021, %v945
          %v1032 = vmul.f32 %v1025, %v946
          %v1033 = vmul.f32 %v1029, %v947
          %v1034 = vadd.f32 %v990, %v1030
          %v1035 = vadd.f32 %v991, %v1031
          %v1036 = vadd.f32 %v992, %v1032
          %v1037 = vadd.f32 %v993, %v1033
          %v1038 = vlaneseq
          %v1039 = vshrl.u32 %v1038, 7
          %v1040 = vsub.s32 2, %v1039
          %v1041 = vrot.slane %v938, %v1040
          %v1042 = vlaneseq
          %v1043 = vshrl.u32 %v1042, 7
          %v1044 = vsub.s32 6, %v1043
          %v1045 = vrot.slane %v938, %v1044
          %v1046 = vlaneseq
          %v1047 = vshrl.u32 %v1046, 7
          %v1048 = vsub.s32 2, %v1047
          %v1049 = vrot.slane %v939, %v1048
          %v1050 = vlaneseq
          %v1051 = vshrl.u32 %v1050, 7
          %v1052 = vsub.s32 6, %v1051
          %v1053 = vrot.slane %v939, %v1052
          %v1058 = vlaneseq
          %v1059 = vshrl.u32 %v1058, 7
          %v1060 = vsub.s32 2, %v1059
          %v1061 = vrot.slane %v1041, %v1060
          %v1062 = vlaneseq
          %v1063 = vshrl.u32 %v1062, 7
          %v1064 = vsub.s32 2, %v1063
          %v1065 = vrot.slane %v1045, %v1064
          %v1066 = vlaneseq
          %v1067 = vshrl.u32 %v1066, 7
          %v1068 = vsub.s32 2, %v1067
          %v1069 = vrot.slane %v1049, %v1068
          %v1070 = vlaneseq
          %v1071 = vshrl.u32 %v1070, 7
          %v1072 = vsub.s32 2, %v1071
          %v1073 = vrot.slane %v1053, %v1072
          %v1074 = vmul.f32 %v1061, %v948
          %v1075 = vmul.f32 %v1065, %v949
          %v1076 = vmul.f32 %v1069, %v950
          %v1077 = vmul.f32 %v1073, %v951
          %v1078 = vadd.f32 %v1034, %v1074
          %v1079 = vadd.f32 %v1035, %v1075
          %v1080 = vadd.f32 %v1036, %v1076
          %v1081 = vadd.f32 %v1037, %v1077
          %v1086 = vcombine.low %v1078, %v1079
          %v1087 = vcombine.low %v1080, %v1081
          %1090 = vst [vmem:[%s255] sm:$0x77] %v1086
          %1091 = vst [vmem:[%s255 + $0x8] sm:$0x77] %v1087
        $region56: #{tpu_custom_call.1} parent=31 // pred_fallthru
          _
        %s1092 = sand.u32 %s121, 1
        %s1093 = scalar_lea.sflag [#allocation7], %s1092
        %s1094 = sand.u32 %s121, 1
        %s1095 = smul.addr %s1094, 16
        %s1096 = scalar_lea.vmem [#allocation11], %s1095
        // Predicated region
        $region57: #{tpu_custom_call.1} parent=31 // pred_check
          %p1097 = pneg %p131
        $region58: #{tpu_custom_call.1} parent=31 // pred_check_branch
          %1099 = sbr.rel (%p1097) target = $region60
        $region59: #{tpu_custom_call.1} parent=31 // pred_region
          %s1100 = smul.u32 4, %s32
          %s1102 = ssub.s32 256, 256
          %1103 = vsyncadd %s1093, %s1102
          %s1104 = smul.addr %s1100, 64
          %s1105 = scalar_lea.hbm %s4, %s1104
          %s1107 = sshll.u32 %s1096, 4
          %s1108 = int_to_ptr.vmem [resolvable:$true] %s1107
          %1110 = dma.vmem_to_hbm [thread:$0]  %s1108, 256, %s1105, %s1093
        $region60: #{tpu_custom_call.1} parent=31 // pred_fallthru
          _
      $region32: #{tpu_custom_call.1} parent=5 // pred_fallthru
        _
      %p1111 = scmp.le.s32.totalorder 2, %s23
      // Predicated region
      $region61: #{tpu_custom_call.1} parent=5 // pred_check
        %p1112 = pneg %p1111
      $region62: #{tpu_custom_call.1} parent=5 // pred_check_branch
        %1114 = sbr.rel (%p1112) target = $region64
      $region63: #{tpu_custom_call.1} parent=5 // pred_region
        %s1115 = ssub.s32 %s23, 2
        // Predicated region
        $region65: #{tpu_custom_call.1} parent=63 // pred_check
          %p1116 = pneg %p137
        $region66: #{tpu_custom_call.1} parent=63 // pred_check_branch
          %1118 = sbr.rel (%p1116) target = $region68
        $region67: #{tpu_custom_call.1} parent=63 // pred_region
          %s1119 = sand.u32 %s122, 1
          %s1120 = scalar_lea.sflag [#allocation7], %s1119
          %s1121 = sand.u32 %s122, 1
          %s1122 = smul.addr %s1121, 16
          %s1123 = scalar_lea.vmem [#allocation11], %s1122
          %1124 = dma.done %s1120, 256
        $region68: #{tpu_custom_call.1} parent=63 // pred_fallthru
          _
      $region64: #{tpu_custom_call.1} parent=5 // pred_fallthru
        _
    $region6: #{tpu_custom_call.1} parent=1 // loop_footer
      %s27 = sadd.s32 1, %s23
    $region7: #{tpu_custom_call.1} parent=1 // loop_footer_branch
      %22 = sbr.rel target = $region3
    $region8: #{tpu_custom_call.1} parent=1 // loop_exit
      _
    %1125 = vsyncpa [#allocation6], 1
    %s1126 = scalar_lea.sflag [#allocation6], 1
    %1127 = vsyncpa %s1126, 1
    %1128 = vsyncpa [#allocation9], 1
    %s1129 = scalar_lea.sflag [#allocation9], 1
    %1130 = vsyncpa %s1129, 1
    %1131 = vsyncpa [#allocation7], 1
    %s1132 = scalar_lea.sflag [#allocation7], 1
    %1133 = vsyncpa %s1132, 1

</llo_original>
